<compile_context>
chip_gen: v6e
topology: v6e:2x2x1
jax: 0.10.0
libtpu: 0.0.40
codegen_flags: <defaults>
</compile_context>

<pallas_src>
import functools

import jax
import jax.numpy as jnp
from jax.experimental import pallas as pl
from jax.experimental.pallas import tpu as pltpu


def label_embedder_kernel(labels_ref, drop_ref, table_hbm, o_ref, copy_sems,
                          *, tm, num_classes):
    """Gather `tm` embedding rows for one output tile.

    labels_ref, drop_ref : SMEM int32[(n_pad,)]   (scalar prefetch)
    table_hbm            : HBM  f32[(V, H)]       (raw ref, manual DMA)
    o_ref                : VMEM f32[(tm, H)]      (output tile)
    copy_sems            : DMA semaphores, shape (tm,)
    """
    i = pl.program_id(0)
    base = i * tm

    # Issue all row-gather DMAs for this tile (overlapped), then wait.
    for r in range(tm):
        lbl = labels_ref[base + r]
        # classifier-free-guidance token drop: replace with the CFG row.
        lbl = jnp.where(drop_ref[base + r] == 1, num_classes, lbl)
        pltpu.make_async_copy(
            table_hbm.at[pl.ds(lbl, 1), :],   # (1, H) row in HBM
            o_ref.at[pl.ds(r, 1), :],         # (1, H) slot in the output tile
            copy_sems.at[r],
        ).start()

    for r in range(tm):
        pltpu.make_async_copy(
            table_hbm.at[pl.ds(0, 1), :],     # shape-matching descriptor
            o_ref.at[pl.ds(r, 1), :],
            copy_sems.at[r],
        ).wait()


def label_embedder(labels, table, num_classes, dropout_prob, *,
                   train=False, force_drop_ids=None, rng_key=None, tm=8):
    """JAX/Pallas equivalent of LabelEmbedder.forward.

    labels : (N,) int32 class ids
    table  : (num_classes + use_cfg, hidden) embedding table
    Returns (N, hidden) embeddings.
    """
    n = labels.shape[0]
    hidden = table.shape[1]

    # --- token_drop logic (matches PyTorch control flow) --------------------
    if force_drop_ids is not None:
        drop_ids = (force_drop_ids == 1).astype(jnp.int32)
    elif train and dropout_prob > 0:
        # TODO(synk): torch.rand RNG is not reproducible in JAX; we use
        # jax.random with an explicit key for the random label dropout.
        drop_ids = (jax.random.uniform(rng_key, (n,)) < dropout_prob).astype(jnp.int32)
    else:
        drop_ids = jnp.zeros((n,), jnp.int32)

    # --- pad N up to a multiple of the row-tile size -------------------------
    n_pad = int(pl.cdiv(n, tm)) * tm
    labels_p = jnp.zeros((n_pad,), jnp.int32).at[:n].set(labels.astype(jnp.int32))
    drop_p = jnp.zeros((n_pad,), jnp.int32).at[:n].set(drop_ids)

    kernel = functools.partial(label_embedder_kernel, tm=tm, num_classes=num_classes)

    out = pl.pallas_call(
        kernel,
        out_shape=jax.ShapeDtypeStruct((n_pad, hidden), table.dtype),
        grid_spec=pltpu.PrefetchScalarGridSpec(
            num_scalar_prefetch=2,                      # labels_p, drop_p -> SMEM
            grid=(n_pad // tm,),
            in_specs=[pl.BlockSpec(memory_space=pl.ANY)],   # table stays in HBM
            out_specs=pl.BlockSpec((tm, hidden), lambda i, lbl, drp: (i, 0)),
            scratch_shapes=[pltpu.SemaphoreType.DMA((tm,))],
        ),
        compiler_params=pltpu.CompilerParams(
            dimension_semantics=("parallel",),
        ),
    )(labels_p, drop_p, table)

    return out[:n]


def init_table(key, num_classes, hidden, dropout_prob):
    use_cfg = 1 if dropout_prob > 0 else 0
    return jax.random.normal(key, (num_classes + use_cfg, hidden), jnp.float32) * 0.02


def reference(labels, table, num_classes, drop_ids):
    lbl = jnp.where(drop_ids == 1, num_classes, labels)
    return table[lbl]


if __name__ == "__main__":
    key = jax.random.PRNGKey(0)
    k_tab, k_lbl, k_drop = jax.random.split(key, 3)

    NUM_CLASSES = 10
    HIDDEN = 128
    DROPOUT = 0.1
    N = 13                        # deliberately not a multiple of tm=8 (exercises padding)

    table = init_table(k_tab, NUM_CLASSES, HIDDEN, DROPOUT)          # (11, 128)
    labels = jax.random.randint(k_lbl, (N,), 0, NUM_CLASSES, jnp.int32)

    # 1) eval path: no dropout applied
    out_eval = jax.block_until_ready(
        label_embedder(labels, table, NUM_CLASSES, DROPOUT, train=False))
    ref_eval = reference(labels, table, NUM_CLASSES, jnp.zeros((N,), jnp.int32))
    assert out_eval.shape == (N, HIDDEN), out_eval.shape
    assert jnp.array_equal(out_eval, ref_eval), float(jnp.max(jnp.abs(out_eval - ref_eval)))

    # 2) forced-drop path (classifier-free guidance)
    force_drop = (jnp.arange(N) % 3 == 0).astype(jnp.int32)
    out_cfg = jax.block_until_ready(
        label_embedder(labels, table, NUM_CLASSES, DROPOUT,
                       train=False, force_drop_ids=force_drop))
    ref_cfg = reference(labels, table, NUM_CLASSES, force_drop)
    assert jnp.array_equal(out_cfg, ref_cfg), float(jnp.max(jnp.abs(out_cfg - ref_cfg)))

    # 3) train path with random dropout (deterministic via explicit key)
    drop_ids_train = (jax.random.uniform(k_drop, (N,)) < DROPOUT).astype(jnp.int32)
    out_train = jax.block_until_ready(
        label_embedder(labels, table, NUM_CLASSES, DROPOUT,
                       train=True, rng_key=k_drop))
    ref_train = reference(labels, table, NUM_CLASSES, drop_ids_train)
    assert jnp.array_equal(out_train, ref_train)

    print("KERNEL_OK")
</pallas_src>

<mosaic_0001>
module attributes {stable_mosaic.version = 11 : i64} {
  func.func @label_embedder_kernel(%arg0: i32, %arg1: memref<16xi32, #tpu.memory_space<smem>>, %arg2: memref<16xi32, #tpu.memory_space<smem>>, %arg3: memref<11x128xf32, #tpu.memory_space<any>>, %arg4: memref<8x128xf32, #tpu.memory_space<vmem>>, %arg5: memref<8x!tpu.dma_semaphore, #tpu.memory_space<semaphore_mem>>) attributes {dimension_semantics = [#tpu.dimension_semantics<parallel>], iteration_bounds = array<i64: 2>, scalar_prefetch = 2 : i64, scratch_operands = 1 : i64, tpu.core_type = #tpu.core_type<tc>, window_params = [{}, {transform_indices = @transform_1, window_bounds = array<i64: 8, 128>}]} {
    %c8_i32 = arith.constant 8 : i32
    %0 = arith.muli %arg0, %c8_i32 : i32
    %c0_i32 = arith.constant 0 : i32
    %1 = arith.addi %0, %c0_i32 : i32
    %2 = arith.index_cast %1 : i32 to index
    %3 = memref.load %arg1[%2] : memref<16xi32, #tpu.memory_space<smem>>
    %c0_i32_0 = arith.constant 0 : i32
    %4 = arith.addi %0, %c0_i32_0 : i32
    %5 = arith.index_cast %4 : i32 to index
    %6 = memref.load %arg2[%5] : memref<16xi32, #tpu.memory_space<smem>>
    %c1_i32 = arith.constant 1 : i32
    %7 = arith.cmpi eq, %6, %c1_i32 : i32
    %c10_i32 = arith.constant 10 : i32
    %8 = arith.select %7, %c10_i32, %3 : i32
    %c0_i32_1 = arith.constant 0 : i32
    %c0_i32_2 = arith.constant 0 : i32
    %9 = tpu.memref_slice %arg3[%8, %c0_i32_2] : memref<11x128xf32, #tpu.memory_space<any>> -> memref<1x128xf32, #tpu.memory_space<any>>
    %c0_i32_3 = arith.constant 0 : i32
    %c0_i32_4 = arith.constant 0 : i32
    %10 = tpu.memref_slice %arg4[%c0_i32_3, %c0_i32_4] : memref<8x128xf32, #tpu.memory_space<vmem>> -> memref<1x128xf32, #tpu.memory_space<vmem>>
    %11 = tpu.memref_slice %arg5[%c0_i32_1] : memref<8x!tpu.dma_semaphore, #tpu.memory_space<semaphore_mem>> -> memref<1x!tpu.dma_semaphore, #tpu.memory_space<semaphore_mem>>
    %12 = tpu.memref_squeeze %11 : memref<1x!tpu.dma_semaphore, #tpu.memory_space<semaphore_mem>> -> memref<!tpu.dma_semaphore, #tpu.memory_space<semaphore_mem>>
    tpu.enqueue_dma source(%9 : memref<1x128xf32, #tpu.memory_space<any>>) target(%10 : memref<1x128xf32, #tpu.memory_space<vmem>>) target_semaphore(%12 : memref<!tpu.dma_semaphore, #tpu.memory_space<semaphore_mem>>)
    %c1_i32_5 = arith.constant 1 : i32
    %13 = arith.addi %0, %c1_i32_5 : i32
    %14 = arith.index_cast %13 : i32 to index
    %15 = memref.load %arg1[%14] : memref<16xi32, #tpu.memory_space<smem>>
    %c1_i32_6 = arith.constant 1 : i32
    %16 = arith.addi %0, %c1_i32_6 : i32
    %17 = arith.index_cast %16 : i32 to index
    %18 = memref.load %arg2[%17] : memref<16xi32, #tpu.memory_space<smem>>
    %c1_i32_7 = arith.constant 1 : i32
    %19 = arith.cmpi eq, %18, %c1_i32_7 : i32
    %c10_i32_8 = arith.constant 10 : i32
    %20 = arith.select %19, %c10_i32_8, %15 : i32
    %c1_i32_9 = arith.constant 1 : i32
    %c0_i32_10 = arith.constant 0 : i32
    %21 = tpu.memref_slice %arg3[%20, %c0_i32_10] : memref<11x128xf32, #tpu.memory_space<any>> -> memref<1x128xf32, #tpu.memory_space<any>>
    %c1_i32_11 = arith.constant 1 : i32
    %c0_i32_12 = arith.constant 0 : i32
    %22 = tpu.memref_slice %arg4[%c1_i32_11, %c0_i32_12] : memref<8x128xf32, #tpu.memory_space<vmem>> -> memref<1x128xf32, #tpu.memory_space<vmem>>
    %23 = tpu.memref_slice %arg5[%c1_i32_9] : memref<8x!tpu.dma_semaphore, #tpu.memory_space<semaphore_mem>> -> memref<1x!tpu.dma_semaphore, #tpu.memory_space<semaphore_mem>>
    %24 = tpu.memref_squeeze %23 : memref<1x!tpu.dma_semaphore, #tpu.memory_space<semaphore_mem>> -> memref<!tpu.dma_semaphore, #tpu.memory_space<semaphore_mem>>
    tpu.enqueue_dma source(%21 : memref<1x128xf32, #tpu.memory_space<any>>) target(%22 : memref<1x128xf32, #tpu.memory_space<vmem>>) target_semaphore(%24 : memref<!tpu.dma_semaphore, #tpu.memory_space<semaphore_mem>>)
    %c2_i32 = arith.constant 2 : i32
    %25 = arith.addi %0, %c2_i32 : i32
    %26 = arith.index_cast %25 : i32 to index
    %27 = memref.load %arg1[%26] : memref<16xi32, #tpu.memory_space<smem>>
    %c2_i32_13 = arith.constant 2 : i32
    %28 = arith.addi %0, %c2_i32_13 : i32
    %29 = arith.index_cast %28 : i32 to index
    %30 = memref.load %arg2[%29] : memref<16xi32, #tpu.memory_space<smem>>
    %c1_i32_14 = arith.constant 1 : i32
    %31 = arith.cmpi eq, %30, %c1_i32_14 : i32
    %c10_i32_15 = arith.constant 10 : i32
    %32 = arith.select %31, %c10_i32_15, %27 : i32
    %c2_i32_16 = arith.constant 2 : i32
    %c0_i32_17 = arith.constant 0 : i32
    %33 = tpu.memref_slice %arg3[%32, %c0_i32_17] : memref<11x128xf32, #tpu.memory_space<any>> -> memref<1x128xf32, #tpu.memory_space<any>>
    %c2_i32_18 = arith.constant 2 : i32
    %c0_i32_19 = arith.constant 0 : i32
    %34 = tpu.memref_slice %arg4[%c2_i32_18, %c0_i32_19] : memref<8x128xf32, #tpu.memory_space<vmem>> -> memref<1x128xf32, #tpu.memory_space<vmem>>
    %35 = tpu.memref_slice %arg5[%c2_i32_16] : memref<8x!tpu.dma_semaphore, #tpu.memory_space<semaphore_mem>> -> memref<1x!tpu.dma_semaphore, #tpu.memory_space<semaphore_mem>>
    %36 = tpu.memref_squeeze %35 : memref<1x!tpu.dma_semaphore, #tpu.memory_space<semaphore_mem>> -> memref<!tpu.dma_semaphore, #tpu.memory_space<semaphore_mem>>
    tpu.enqueue_dma source(%33 : memref<1x128xf32, #tpu.memory_space<any>>) target(%34 : memref<1x128xf32, #tpu.memory_space<vmem>>) target_semaphore(%36 : memref<!tpu.dma_semaphore, #tpu.memory_space<semaphore_mem>>)
    %c3_i32 = arith.constant 3 : i32
    %37 = arith.addi %0, %c3_i32 : i32
    %38 = arith.index_cast %37 : i32 to index
    %39 = memref.load %arg1[%38] : memref<16xi32, #tpu.memory_space<smem>>
    %c3_i32_20 = arith.constant 3 : i32
    %40 = arith.addi %0, %c3_i32_20 : i32
    %41 = arith.index_cast %40 : i32 to index
    %42 = memref.load %arg2[%41] : memref<16xi32, #tpu.memory_space<smem>>
    %c1_i32_21 = arith.constant 1 : i32
    %43 = arith.cmpi eq, %42, %c1_i32_21 : i32
    %c10_i32_22 = arith.constant 10 : i32
    %44 = arith.select %43, %c10_i32_22, %39 : i32
    %c3_i32_23 = arith.constant 3 : i32
    %c0_i32_24 = arith.constant 0 : i32
    %45 = tpu.memref_slice %arg3[%44, %c0_i32_24] : memref<11x128xf32, #tpu.memory_space<any>> -> memref<1x128xf32, #tpu.memory_space<any>>
    %c3_i32_25 = arith.constant 3 : i32
    %c0_i32_26 = arith.constant 0 : i32
    %46 = tpu.memref_slice %arg4[%c3_i32_25, %c0_i32_26] : memref<8x128xf32, #tpu.memory_space<vmem>> -> memref<1x128xf32, #tpu.memory_space<vmem>>
    %47 = tpu.memref_slice %arg5[%c3_i32_23] : memref<8x!tpu.dma_semaphore, #tpu.memory_space<semaphore_mem>> -> memref<1x!tpu.dma_semaphore, #tpu.memory_space<semaphore_mem>>
    %48 = tpu.memref_squeeze %47 : memref<1x!tpu.dma_semaphore, #tpu.memory_space<semaphore_mem>> -> memref<!tpu.dma_semaphore, #tpu.memory_space<semaphore_mem>>
    tpu.enqueue_dma source(%45 : memref<1x128xf32, #tpu.memory_space<any>>) target(%46 : memref<1x128xf32, #tpu.memory_space<vmem>>) target_semaphore(%48 : memref<!tpu.dma_semaphore, #tpu.memory_space<semaphore_mem>>)
    %c4_i32 = arith.constant 4 : i32
    %49 = arith.addi %0, %c4_i32 : i32
    %50 = arith.index_cast %49 : i32 to index
    %51 = memref.load %arg1[%50] : memref<16xi32, #tpu.memory_space<smem>>
    %c4_i32_27 = arith.constant 4 : i32
    %52 = arith.addi %0, %c4_i32_27 : i32
    %53 = arith.index_cast %52 : i32 to index
    %54 = memref.load %arg2[%53] : memref<16xi32, #tpu.memory_space<smem>>
    %c1_i32_28 = arith.constant 1 : i32
    %55 = arith.cmpi eq, %54, %c1_i32_28 : i32
    %c10_i32_29 = arith.constant 10 : i32
    %56 = arith.select %55, %c10_i32_29, %51 : i32
    %c4_i32_30 = arith.constant 4 : i32
    %c0_i32_31 = arith.constant 0 : i32
    %57 = tpu.memref_slice %arg3[%56, %c0_i32_31] : memref<11x128xf32, #tpu.memory_space<any>> -> memref<1x128xf32, #tpu.memory_space<any>>
    %c4_i32_32 = arith.constant 4 : i32
    %c0_i32_33 = arith.constant 0 : i32
    %58 = tpu.memref_slice %arg4[%c4_i32_32, %c0_i32_33] : memref<8x128xf32, #tpu.memory_space<vmem>> -> memref<1x128xf32, #tpu.memory_space<vmem>>
    %59 = tpu.memref_slice %arg5[%c4_i32_30] : memref<8x!tpu.dma_semaphore, #tpu.memory_space<semaphore_mem>> -> memref<1x!tpu.dma_semaphore, #tpu.memory_space<semaphore_mem>>
    %60 = tpu.memref_squeeze %59 : memref<1x!tpu.dma_semaphore, #tpu.memory_space<semaphore_mem>> -> memref<!tpu.dma_semaphore, #tpu.memory_space<semaphore_mem>>
    tpu.enqueue_dma source(%57 : memref<1x128xf32, #tpu.memory_space<any>>) target(%58 : memref<1x128xf32, #tpu.memory_space<vmem>>) target_semaphore(%60 : memref<!tpu.dma_semaphore, #tpu.memory_space<semaphore_mem>>)
    %c5_i32 = arith.constant 5 : i32
    %61 = arith.addi %0, %c5_i32 : i32
    %62 = arith.index_cast %61 : i32 to index
    %63 = memref.load %arg1[%62] : memref<16xi32, #tpu.memory_space<smem>>
    %c5_i32_34 = arith.constant 5 : i32
    %64 = arith.addi %0, %c5_i32_34 : i32
    %65 = arith.index_cast %64 : i32 to index
    %66 = memref.load %arg2[%65] : memref<16xi32, #tpu.memory_space<smem>>
    %c1_i32_35 = arith.constant 1 : i32
    %67 = arith.cmpi eq, %66, %c1_i32_35 : i32
    %c10_i32_36 = arith.constant 10 : i32
    %68 = arith.select %67, %c10_i32_36, %63 : i32
    %c5_i32_37 = arith.constant 5 : i32
    %c0_i32_38 = arith.constant 0 : i32
    %69 = tpu.memref_slice %arg3[%68, %c0_i32_38] : memref<11x128xf32, #tpu.memory_space<any>> -> memref<1x128xf32, #tpu.memory_space<any>>
    %c5_i32_39 = arith.constant 5 : i32
    %c0_i32_40 = arith.constant 0 : i32
    %70 = tpu.memref_slice %arg4[%c5_i32_39, %c0_i32_40] : memref<8x128xf32, #tpu.memory_space<vmem>> -> memref<1x128xf32, #tpu.memory_space<vmem>>
    %71 = tpu.memref_slice %arg5[%c5_i32_37] : memref<8x!tpu.dma_semaphore, #tpu.memory_space<semaphore_mem>> -> memref<1x!tpu.dma_semaphore, #tpu.memory_space<semaphore_mem>>
    %72 = tpu.memref_squeeze %71 : memref<1x!tpu.dma_semaphore, #tpu.memory_space<semaphore_mem>> -> memref<!tpu.dma_semaphore, #tpu.memory_space<semaphore_mem>>
    tpu.enqueue_dma source(%69 : memref<1x128xf32, #tpu.memory_space<any>>) target(%70 : memref<1x128xf32, #tpu.memory_space<vmem>>) target_semaphore(%72 : memref<!tpu.dma_semaphore, #tpu.memory_space<semaphore_mem>>)
    %c6_i32 = arith.constant 6 : i32
    %73 = arith.addi %0, %c6_i32 : i32
    %74 = arith.index_cast %73 : i32 to index
    %75 = memref.load %arg1[%74] : memref<16xi32, #tpu.memory_space<smem>>
    %c6_i32_41 = arith.constant 6 : i32
    %76 = arith.addi %0, %c6_i32_41 : i32
    %77 = arith.index_cast %76 : i32 to index
    %78 = memref.load %arg2[%77] : memref<16xi32, #tpu.memory_space<smem>>
    %c1_i32_42 = arith.constant 1 : i32
    %79 = arith.cmpi eq, %78, %c1_i32_42 : i32
    %c10_i32_43 = arith.constant 10 : i32
    %80 = arith.select %79, %c10_i32_43, %75 : i32
    %c6_i32_44 = arith.constant 6 : i32
    %c0_i32_45 = arith.constant 0 : i32
    %81 = tpu.memref_slice %arg3[%80, %c0_i32_45] : memref<11x128xf32, #tpu.memory_space<any>> -> memref<1x128xf32, #tpu.memory_space<any>>
    %c6_i32_46 = arith.constant 6 : i32
    %c0_i32_47 = arith.constant 0 : i32
    %82 = tpu.memref_slice %arg4[%c6_i32_46, %c0_i32_47] : memref<8x128xf32, #tpu.memory_space<vmem>> -> memref<1x128xf32, #tpu.memory_space<vmem>>
    %83 = tpu.memref_slice %arg5[%c6_i32_44] : memref<8x!tpu.dma_semaphore, #tpu.memory_space<semaphore_mem>> -> memref<1x!tpu.dma_semaphore, #tpu.memory_space<semaphore_mem>>
    %84 = tpu.memref_squeeze %83 : memref<1x!tpu.dma_semaphore, #tpu.memory_space<semaphore_mem>> -> memref<!tpu.dma_semaphore, #tpu.memory_space<semaphore_mem>>
    tpu.enqueue_dma source(%81 : memref<1x128xf32, #tpu.memory_space<any>>) target(%82 : memref<1x128xf32, #tpu.memory_space<vmem>>) target_semaphore(%84 : memref<!tpu.dma_semaphore, #tpu.memory_space<semaphore_mem>>)
    %c7_i32 = arith.constant 7 : i32
    %85 = arith.addi %0, %c7_i32 : i32
    %86 = arith.index_cast %85 : i32 to index
    %87 = memref.load %arg1[%86] : memref<16xi32, #tpu.memory_space<smem>>
    %c7_i32_48 = arith.constant 7 : i32
    %88 = arith.addi %0, %c7_i32_48 : i32
    %89 = arith.index_cast %88 : i32 to index
    %90 = memref.load %arg2[%89] : memref<16xi32, #tpu.memory_space<smem>>
    %c1_i32_49 = arith.constant 1 : i32
    %91 = arith.cmpi eq, %90, %c1_i32_49 : i32
    %c10_i32_50 = arith.constant 10 : i32
    %92 = arith.select %91, %c10_i32_50, %87 : i32
    %c7_i32_51 = arith.constant 7 : i32
    %c0_i32_52 = arith.constant 0 : i32
    %93 = tpu.memref_slice %arg3[%92, %c0_i32_52] : memref<11x128xf32, #tpu.memory_space<any>> -> memref<1x128xf32, #tpu.memory_space<any>>
    %c7_i32_53 = arith.constant 7 : i32
    %c0_i32_54 = arith.constant 0 : i32
    %94 = tpu.memref_slice %arg4[%c7_i32_53, %c0_i32_54] : memref<8x128xf32, #tpu.memory_space<vmem>> -> memref<1x128xf32, #tpu.memory_space<vmem>>
    %95 = tpu.memref_slice %arg5[%c7_i32_51] : memref<8x!tpu.dma_semaphore, #tpu.memory_space<semaphore_mem>> -> memref<1x!tpu.dma_semaphore, #tpu.memory_space<semaphore_mem>>
    %96 = tpu.memref_squeeze %95 : memref<1x!tpu.dma_semaphore, #tpu.memory_space<semaphore_mem>> -> memref<!tpu.dma_semaphore, #tpu.memory_space<semaphore_mem>>
    tpu.enqueue_dma source(%93 : memref<1x128xf32, #tpu.memory_space<any>>) target(%94 : memref<1x128xf32, #tpu.memory_space<vmem>>) target_semaphore(%96 : memref<!tpu.dma_semaphore, #tpu.memory_space<semaphore_mem>>)
    %c0_i32_55 = arith.constant 0 : i32
    %c0_i32_56 = arith.constant 0 : i32
    %c0_i32_57 = arith.constant 0 : i32
    %97 = tpu.memref_slice %arg3[%c0_i32_56, %c0_i32_57] : memref<11x128xf32, #tpu.memory_space<any>> -> memref<1x128xf32, #tpu.memory_space<any>>
    %c0_i32_58 = arith.constant 0 : i32
    %c0_i32_59 = arith.constant 0 : i32
    %98 = tpu.memref_slice %arg4[%c0_i32_58, %c0_i32_59] : memref<8x128xf32, #tpu.memory_space<vmem>> -> memref<1x128xf32, #tpu.memory_space<vmem>>
    %99 = tpu.memref_slice %arg5[%c0_i32_55] : memref<8x!tpu.dma_semaphore, #tpu.memory_space<semaphore_mem>> -> memref<1x!tpu.dma_semaphore, #tpu.memory_space<semaphore_mem>>
    %100 = tpu.memref_squeeze %99 : memref<1x!tpu.dma_semaphore, #tpu.memory_space<semaphore_mem>> -> memref<!tpu.dma_semaphore, #tpu.memory_space<semaphore_mem>>
    tpu.wait_dma2 semaphore(%100 : memref<!tpu.dma_semaphore, #tpu.memory_space<semaphore_mem>>) src(%97 : memref<1x128xf32, #tpu.memory_space<any>>) dst(%98 : memref<1x128xf32, #tpu.memory_space<vmem>>)
    %c1_i32_60 = arith.constant 1 : i32
    %c0_i32_61 = arith.constant 0 : i32
    %c0_i32_62 = arith.constant 0 : i32
    %101 = tpu.memref_slice %arg3[%c0_i32_61, %c0_i32_62] : memref<11x128xf32, #tpu.memory_space<any>> -> memref<1x128xf32, #tpu.memory_space<any>>
    %c1_i32_63 = arith.constant 1 : i32
    %c0_i32_64 = arith.constant 0 : i32
    %102 = tpu.memref_slice %arg4[%c1_i32_63, %c0_i32_64] : memref<8x128xf32, #tpu.memory_space<vmem>> -> memref<1x128xf32, #tpu.memory_space<vmem>>
    %103 = tpu.memref_slice %arg5[%c1_i32_60] : memref<8x!tpu.dma_semaphore, #tpu.memory_space<semaphore_mem>> -> memref<1x!tpu.dma_semaphore, #tpu.memory_space<semaphore_mem>>
    %104 = tpu.memref_squeeze %103 : memref<1x!tpu.dma_semaphore, #tpu.memory_space<semaphore_mem>> -> memref<!tpu.dma_semaphore, #tpu.memory_space<semaphore_mem>>
    tpu.wait_dma2 semaphore(%104 : memref<!tpu.dma_semaphore, #tpu.memory_space<semaphore_mem>>) src(%101 : memref<1x128xf32, #tpu.memory_space<any>>) dst(%102 : memref<1x128xf32, #tpu.memory_space<vmem>>)
    %c2_i32_65 = arith.constant 2 : i32
    %c0_i32_66 = arith.constant 0 : i32
    %c0_i32_67 = arith.constant 0 : i32
    %105 = tpu.memref_slice %arg3[%c0_i32_66, %c0_i32_67] : memref<11x128xf32, #tpu.memory_space<any>> -> memref<1x128xf32, #tpu.memory_space<any>>
    %c2_i32_68 = arith.constant 2 : i32
    %c0_i32_69 = arith.constant 0 : i32
    %106 = tpu.memref_slice %arg4[%c2_i32_68, %c0_i32_69] : memref<8x128xf32, #tpu.memory_space<vmem>> -> memref<1x128xf32, #tpu.memory_space<vmem>>
    %107 = tpu.memref_slice %arg5[%c2_i32_65] : memref<8x!tpu.dma_semaphore, #tpu.memory_space<semaphore_mem>> -> memref<1x!tpu.dma_semaphore, #tpu.memory_space<semaphore_mem>>
    %108 = tpu.memref_squeeze %107 : memref<1x!tpu.dma_semaphore, #tpu.memory_space<semaphore_mem>> -> memref<!tpu.dma_semaphore, #tpu.memory_space<semaphore_mem>>
    tpu.wait_dma2 semaphore(%108 : memref<!tpu.dma_semaphore, #tpu.memory_space<semaphore_mem>>) src(%105 : memref<1x128xf32, #tpu.memory_space<any>>) dst(%106 : memref<1x128xf32, #tpu.memory_space<vmem>>)
    %c3_i32_70 = arith.constant 3 : i32
    %c0_i32_71 = arith.constant 0 : i32
    %c0_i32_72 = arith.constant 0 : i32
    %109 = tpu.memref_slice %arg3[%c0_i32_71, %c0_i32_72] : memref<11x128xf32, #tpu.memory_space<any>> -> memref<1x128xf32, #tpu.memory_space<any>>
    %c3_i32_73 = arith.constant 3 : i32
    %c0_i32_74 = arith.constant 0 : i32
    %110 = tpu.memref_slice %arg4[%c3_i32_73, %c0_i32_74] : memref<8x128xf32, #tpu.memory_space<vmem>> -> memref<1x128xf32, #tpu.memory_space<vmem>>
    %111 = tpu.memref_slice %arg5[%c3_i32_70] : memref<8x!tpu.dma_semaphore, #tpu.memory_space<semaphore_mem>> -> memref<1x!tpu.dma_semaphore, #tpu.memory_space<semaphore_mem>>
    %112 = tpu.memref_squeeze %111 : memref<1x!tpu.dma_semaphore, #tpu.memory_space<semaphore_mem>> -> memref<!tpu.dma_semaphore, #tpu.memory_space<semaphore_mem>>
    tpu.wait_dma2 semaphore(%112 : memref<!tpu.dma_semaphore, #tpu.memory_space<semaphore_mem>>) src(%109 : memref<1x128xf32, #tpu.memory_space<any>>) dst(%110 : memref<1x128xf32, #tpu.memory_space<vmem>>)
    %c4_i32_75 = arith.constant 4 : i32
    %c0_i32_76 = arith.constant 0 : i32
    %c0_i32_77 = arith.constant 0 : i32
    %113 = tpu.memref_slice %arg3[%c0_i32_76, %c0_i32_77] : memref<11x128xf32, #tpu.memory_space<any>> -> memref<1x128xf32, #tpu.memory_space<any>>
    %c4_i32_78 = arith.constant 4 : i32
    %c0_i32_79 = arith.constant 0 : i32
    %114 = tpu.memref_slice %arg4[%c4_i32_78, %c0_i32_79] : memref<8x128xf32, #tpu.memory_space<vmem>> -> memref<1x128xf32, #tpu.memory_space<vmem>>
    %115 = tpu.memref_slice %arg5[%c4_i32_75] : memref<8x!tpu.dma_semaphore, #tpu.memory_space<semaphore_mem>> -> memref<1x!tpu.dma_semaphore, #tpu.memory_space<semaphore_mem>>
    %116 = tpu.memref_squeeze %115 : memref<1x!tpu.dma_semaphore, #tpu.memory_space<semaphore_mem>> -> memref<!tpu.dma_semaphore, #tpu.memory_space<semaphore_mem>>
    tpu.wait_dma2 semaphore(%116 : memref<!tpu.dma_semaphore, #tpu.memory_space<semaphore_mem>>) src(%113 : memref<1x128xf32, #tpu.memory_space<any>>) dst(%114 : memref<1x128xf32, #tpu.memory_space<vmem>>)
    %c5_i32_80 = arith.constant 5 : i32
    %c0_i32_81 = arith.constant 0 : i32
    %c0_i32_82 = arith.constant 0 : i32
    %117 = tpu.memref_slice %arg3[%c0_i32_81, %c0_i32_82] : memref<11x128xf32, #tpu.memory_space<any>> -> memref<1x128xf32, #tpu.memory_space<any>>
    %c5_i32_83 = arith.constant 5 : i32
    %c0_i32_84 = arith.constant 0 : i32
    %118 = tpu.memref_slice %arg4[%c5_i32_83, %c0_i32_84] : memref<8x128xf32, #tpu.memory_space<vmem>> -> memref<1x128xf32, #tpu.memory_space<vmem>>
    %119 = tpu.memref_slice %arg5[%c5_i32_80] : memref<8x!tpu.dma_semaphore, #tpu.memory_space<semaphore_mem>> -> memref<1x!tpu.dma_semaphore, #tpu.memory_space<semaphore_mem>>
    %120 = tpu.memref_squeeze %119 : memref<1x!tpu.dma_semaphore, #tpu.memory_space<semaphore_mem>> -> memref<!tpu.dma_semaphore, #tpu.memory_space<semaphore_mem>>
    tpu.wait_dma2 semaphore(%120 : memref<!tpu.dma_semaphore, #tpu.memory_space<semaphore_mem>>) src(%117 : memref<1x128xf32, #tpu.memory_space<any>>) dst(%118 : memref<1x128xf32, #tpu.memory_space<vmem>>)
    %c6_i32_85 = arith.constant 6 : i32
    %c0_i32_86 = arith.constant 0 : i32
    %c0_i32_87 = arith.constant 0 : i32
    %121 = tpu.memref_slice %arg3[%c0_i32_86, %c0_i32_87] : memref<11x128xf32, #tpu.memory_space<any>> -> memref<1x128xf32, #tpu.memory_space<any>>
    %c6_i32_88 = arith.constant 6 : i32
    %c0_i32_89 = arith.constant 0 : i32
    %122 = tpu.memref_slice %arg4[%c6_i32_88, %c0_i32_89] : memref<8x128xf32, #tpu.memory_space<vmem>> -> memref<1x128xf32, #tpu.memory_space<vmem>>
    %123 = tpu.memref_slice %arg5[%c6_i32_85] : memref<8x!tpu.dma_semaphore, #tpu.memory_space<semaphore_mem>> -> memref<1x!tpu.dma_semaphore, #tpu.memory_space<semaphore_mem>>
    %124 = tpu.memref_squeeze %123 : memref<1x!tpu.dma_semaphore, #tpu.memory_space<semaphore_mem>> -> memref<!tpu.dma_semaphore, #tpu.memory_space<semaphore_mem>>
    tpu.wait_dma2 semaphore(%124 : memref<!tpu.dma_semaphore, #tpu.memory_space<semaphore_mem>>) src(%121 : memref<1x128xf32, #tpu.memory_space<any>>) dst(%122 : memref<1x128xf32, #tpu.memory_space<vmem>>)
    %c7_i32_90 = arith.constant 7 : i32
    %c0_i32_91 = arith.constant 0 : i32
    %c0_i32_92 = arith.constant 0 : i32
    %125 = tpu.memref_slice %arg3[%c0_i32_91, %c0_i32_92] : memref<11x128xf32, #tpu.memory_space<any>> -> memref<1x128xf32, #tpu.memory_space<any>>
    %c7_i32_93 = arith.constant 7 : i32
    %c0_i32_94 = arith.constant 0 : i32
    %126 = tpu.memref_slice %arg4[%c7_i32_93, %c0_i32_94] : memref<8x128xf32, #tpu.memory_space<vmem>> -> memref<1x128xf32, #tpu.memory_space<vmem>>
    %127 = tpu.memref_slice %arg5[%c7_i32_90] : memref<8x!tpu.dma_semaphore, #tpu.memory_space<semaphore_mem>> -> memref<1x!tpu.dma_semaphore, #tpu.memory_space<semaphore_mem>>
    %128 = tpu.memref_squeeze %127 : memref<1x!tpu.dma_semaphore, #tpu.memory_space<semaphore_mem>> -> memref<!tpu.dma_semaphore, #tpu.memory_space<semaphore_mem>>
    tpu.wait_dma2 semaphore(%128 : memref<!tpu.dma_semaphore, #tpu.memory_space<semaphore_mem>>) src(%125 : memref<1x128xf32, #tpu.memory_space<any>>) dst(%126 : memref<1x128xf32, #tpu.memory_space<vmem>>)
    return
  }
  func.func @transform_1(%arg0: i32, %arg1: memref<16xi32, #tpu.memory_space<smem>>, %arg2: memref<16xi32, #tpu.memory_space<smem>>) -> (i32, i32) {
    %c0_i32 = arith.constant 0 : i32
    %c0_i32_0 = arith.constant 0 : i32
    return %arg0, %c0_i32 : i32, i32
  }
}

</mosaic_0001>

<llo_original>
// kernel: tpu_custom_call.1
$region0: #{tpu_custom_call.1}
  #allocation0 [shape = 'u32[]', space=smem, size = 0x4, offset = 0x4, fixed_abs, tag = 'smem constant byte address 0x4 - core index']
  #allocation1 [shape = 'u32[144,128]{1,0:T(1,128)}', space=vmem, size = 0x12000, scoped, tag = 'internal scratch']
  #allocation2 [shape = 's32[8]{0}', space=sflag, size = 0x20, scoped, tag = 'scratch operand']
  #allocation3 [shape = 's32[1]{0}', space=sflag, size = 0x4, scoped, tag = 'scoped memory for tpu_custom_call.1']
  #allocation4 [shape = 'u8[512]{0}', space=smem, size = 0x200, scoped, tag = 'prefetched SMEM operand 0']
  #allocation5 [shape = 'u8[512]{0}', space=smem, size = 0x200, scoped, tag = 'prefetched SMEM operand 1']
  #allocation8 [shape = 's32[]', space=sflag, size = 0x4, offset = 0, fixed_abs, tag = 'sflag constant byte address 0x0 - dummy sync flag']
  #allocation9 [shape = 's32[]', space=sflag, size = 0x4, offset = 0, fixed_abs, tag = 'sflag constant byte address 0x0 - dummy sync flag']
  #allocation10 [shape = 'u32[]', space=smem, size = 0x4, offset = 0x44, fixed_abs, tag = 'smem constant byte address 0x44 - assertion arg 0']
  #allocation11 [shape = 'u32[]', space=smem, size = 0x4, offset = 0x48, fixed_abs, tag = 'smem constant byte address 0x48 - assertion arg 1']
  #allocation12 [shape = 's32[]', space=sflag, size = 0x4, offset = 0, fixed_abs, tag = 'sflag constant byte address 0x0 - dummy sync flag']
  #allocation13 [shape = 's32[]', space=sflag, size = 0x4, offset = 0, fixed_abs, tag = 'sflag constant byte address 0x0 - dummy sync flag']
  #allocation14 [shape = 's32[]', space=sflag, size = 0x4, offset = 0, fixed_abs, tag = 'sflag constant byte address 0x0 - dummy sync flag']
  #allocation15 [shape = 's32[]', space=sflag, size = 0x4, offset = 0, fixed_abs, tag = 'sflag constant byte address 0x0 - dummy sync flag']
  #allocation16 [shape = 's32[]', space=sflag, size = 0x4, offset = 0, fixed_abs, tag = 'sflag constant byte address 0x0 - dummy sync flag']
  #allocation17 [shape = 's32[]', space=sflag, size = 0x4, offset = 0, fixed_abs, tag = 'sflag constant byte address 0x0 - dummy sync flag']
  #allocation18 [shape = 's32[]', space=sflag, size = 0x4, offset = 0, fixed_abs, tag = 'sflag constant byte address 0x0 - dummy sync flag']
  #allocation19 [shape = 's32[]', space=sflag, size = 0x4, offset = 0, fixed_abs, tag = 'sflag constant byte address 0x0 - dummy sync flag']
  #allocation20 [shape = 's32[]', space=sflag, size = 0x4, offset = 0, fixed_abs, tag = 'sflag constant byte address 0x0 - dummy sync flag']
  #allocation21 [shape = 's32[]', space=sflag, size = 0x4, offset = 0, fixed_abs, tag = 'sflag constant byte address 0x0 - dummy sync flag']
  #allocation22 [shape = 's32[]', space=sflag, size = 0x4, offset = 0, fixed_abs, tag = 'sflag constant byte address 0x0 - dummy sync flag']
  #allocation23 [shape = 's32[]', space=sflag, size = 0x4, offset = 0, fixed_abs, tag = 'sflag constant byte address 0x0 - dummy sync flag']
  #allocation24 [shape = 's32[]', space=sflag, size = 0x4, offset = 0, fixed_abs, tag = 'sflag constant byte address 0x0 - dummy sync flag']
  #allocation25 [shape = 's32[]', space=sflag, size = 0x4, offset = 0, fixed_abs, tag = 'sflag constant byte address 0x0 - dummy sync flag']
  %s0 = inlined_call_operand.hbm [shape: s32[16], index: 0, kind: input, shape index: {}]
  %s1 = inlined_call_operand.vmem [shape: s32[16], index: 1, kind: input, shape index: {}]
  %s2 = inlined_call_operand.hbm [shape: f32[11,128], index: 2, kind: input, shape index: {}]
  %s3 = inlined_call_operand.hbm [shape: f32[16,128], index: 3, kind: output, shape index: {}]
  %s4 = sld [smem:[#allocation0]]
  $region57: #{tpu_custom_call.1} parent=0
    _
  %s6 = ssub.s32 1, %s4
  %s7 = scalar_select 0, %s6, %s4
  %9 = dma.hbm_to_smem %s0, 16, [#allocation4], [#allocation3]
  %s10 = sshll.u32 %s1, 4
  %s11 = int_to_ptr.vmem [resolvable:$true] %s10
  %13 = dma.vmem_to_smem %s11, 16, [#allocation5], [#allocation3]
  %14 = dma.done [#allocation3], 32
  %15 = sfence
  $region1: #{tpu_custom_call.1} parent=0
    #allocation6 [shape = 'u8[8192]{0}', space=vmem, size = 0x2000, scoped, tag = 'output window, operand 0']
    #allocation7 [shape = 's32[2]{0}', space=sflag, size = 0x8, scoped, tag = 'scoped memory for tpu_custom_call.1']
    %16 = vsyncpa [#allocation7], 0
    %s17 = scalar_lea.sflag [#allocation7], 1
    %18 = vsyncpa %s17, 0
    loop: start=0, step=1, limit=3
    $region2: #{tpu_custom_call.1} parent=1 // loop_pre_header
      _
    $region3: #{tpu_custom_call.1} parent=1 // loop_header
      %s20 = sphi 0, %s24
      %p21 = scmp.ge.s32.totalorder %s20, 3
      %s29 = sphi 0, %s31
      %s32 = sphi 0, %s29
      %s42 = sphi 0, %s32
    $region4: #{tpu_custom_call.1} parent=1 // loop_header_branch
      %23 = sbr.rel (%p21) target = $region8
    $region5: #{tpu_custom_call.1} parent=1 // loop_body
      %s25 = ssub.s32 %s20, 1
      %s26 = sadd.s32 %s20, 1
      %s27 = ssub.s32 %s20, %s26
      %p28 = scmp.eq.s32.totalorder %s27, 0
      %s30 = sadd.s32 %s29, 1
      %s31 = scalar_select %p28, %s29, %s30
      %p33 = pneg %p28
      %p34 = scmp.eq.s32.totalorder %s20, 1
      %p35 = por %p33, %p34
      %p36 = scmp.ne.s32.totalorder %s29, %s32
      %p37 = scmp.eq.s32.totalorder %s20, 0
      %p38 = por %p36, %p37
      %p39 = scmp.ne.s32.totalorder %s29, %s32
      %p40 = scmp.eq.s32.totalorder %s25, 1
      %p41 = por %p39, %p40
      %p43 = scmp.ne.s32.totalorder %s32, %s42
      %p44 = scmp.eq.s32.totalorder %s25, 0
      %p45 = por %p43, %p44
      %p46 = scmp.lt.s32.totalorder %s20, 2
      // Predicated region
      $region9: #{tpu_custom_call.1} parent=5 // pred_check
        %p47 = pneg %p46
      $region10: #{tpu_custom_call.1} parent=5 // pred_check_branch
        %49 = sbr.rel (%p47) target = $region12
      $region11: #{tpu_custom_call.1} parent=5 // pred_region
        %p50 = pneg %p38
        %p51 = pneg %p35
        %s52 = sand.u32 %s29, 1
        %s53 = scalar_lea.sflag [#allocation7], %s52
        %s54 = sand.u32 %s29, 1
        %s55 = smul.addr %s54, 8
        %s56 = scalar_lea.vmem [#allocation6], %s55
        %s57 = smul.u32 %s20, 8
        %s58 = sld [smem:[#allocation4 + %s57]]
        %s59 = sld [smem:[#allocation5 + %s57]]
        %p60 = scmp.eq.s32.totalorder %s59, 1
        %s61 = scalar_select %p60, 10, %s58
        %s62 = smul.addr %s61, 16
        %s63 = scalar_lea.hbm %s2, %s62
        // Predicated region
        $region13: #{tpu_custom_call.1} parent=11 // pred_check
          _
        $region14: #{tpu_custom_call.1} parent=11 // pred_check_branch
          %65 = sbr.rel target = $region16
        $region15: #{tpu_custom_call.1} parent=11 // pred_region
          %66 = sst [smem:[#allocation10]] [#allocation9]
          %67 = sst [smem:[#allocation11]] [#allocation8]
        $region16: #{tpu_custom_call.1} parent=11 // pred_fallthru
          _
        %69 = shalt.err (0)
        %s71 = sshll.u32 %s56, 4
        %s72 = int_to_ptr.vmem [resolvable:$true] %s71
        %74 = dma.hbm_to_vmem [thread:$0]  %s63, 16, %s72, [#allocation2]
        %s75 = sadd.s32 %s57, 1
        %s76 = sld [smem:[#allocation4 + %s75]]
        %s77 = sld [smem:[#allocation5 + %s75]]
        %p78 = scmp.eq.s32.totalorder %s77, 1
        %s79 = scalar_select %p78, 10, %s76
        %s80 = smul.addr %s79, 16
        %s81 = scalar_lea.hbm %s2, %s80
        %s82 = scalar_lea.vmem %s56, 1 [#allocation6]
        %s83 = scalar_lea.sflag [#allocation2], 1
        // Predicated region
        $region17: #{tpu_custom_call.1} parent=11 // pred_check
          _
        $region18: #{tpu_custom_call.1} parent=11 // pred_check_branch
          %85 = sbr.rel target = $region20
        $region19: #{tpu_custom_call.1} parent=11 // pred_region
          %86 = sst [smem:[#allocation10]] [#allocation13]
          %87 = sst [smem:[#allocation11]] [#allocation12]
        $region20: #{tpu_custom_call.1} parent=11 // pred_fallthru
          _
        %89 = shalt.err (0)
        %s91 = sshll.u32 %s82, 4
        %s92 = int_to_ptr.vmem [resolvable:$true] %s91
        %94 = dma.hbm_to_vmem [thread:$0]  %s81, 16, %s92, %s83
        %s95 = sadd.s32 %s57, 2
        %s96 = sld [smem:[#allocation4 + %s95]]
        %s97 = sld [smem:[#allocation5 + %s95]]
        %p98 = scmp.eq.s32.totalorder %s97, 1
        %s99 = scalar_select %p98, 10, %s96
        %s100 = smul.addr %s99, 16
        %s101 = scalar_lea.hbm %s2, %s100
        %s102 = scalar_lea.vmem %s56, 2 [#allocation6]
        %s103 = scalar_lea.sflag [#allocation2], 2
        // Predicated region
        $region21: #{tpu_custom_call.1} parent=11 // pred_check
          _
        $region22: #{tpu_custom_call.1} parent=11 // pred_check_branch
          %105 = sbr.rel target = $region24
        $region23: #{tpu_custom_call.1} parent=11 // pred_region
          %106 = sst [smem:[#allocation10]] [#allocation15]
          %107 = sst [smem:[#allocation11]] [#allocation14]
        $region24: #{tpu_custom_call.1} parent=11 // pred_fallthru
          _
        %109 = shalt.err (0)
        %s111 = sshll.u32 %s102, 4
        %s112 = int_to_ptr.vmem [resolvable:$true] %s111
        %114 = dma.hbm_to_vmem [thread:$0]  %s101, 16, %s112, %s103
        %s115 = sadd.s32 %s57, 3
        %s116 = sld [smem:[#allocation4 + %s115]]
        %s117 = sld [smem:[#allocation5 + %s115]]
        %p118 = scmp.eq.s32.totalorder %s117, 1
        %s119 = scalar_select %p118, 10, %s116
        %s120 = smul.addr %s119, 16
        %s121 = scalar_lea.hbm %s2, %s120
        %s122 = scalar_lea.vmem %s56, 3 [#allocation6]
        %s123 = scalar_lea.sflag [#allocation2], 3
        // Predicated region
        $region25: #{tpu_custom_call.1} parent=11 // pred_check
          _
        $region26: #{tpu_custom_call.1} parent=11 // pred_check_branch
          %125 = sbr.rel target = $region28
        $region27: #{tpu_custom_call.1} parent=11 // pred_region
          %126 = sst [smem:[#allocation10]] [#allocation17]
          %127 = sst [smem:[#allocation11]] [#allocation16]
        $region28: #{tpu_custom_call.1} parent=11 // pred_fallthru
          _
        %129 = shalt.err (0)
        %s131 = sshll.u32 %s122, 4
        %s132 = int_to_ptr.vmem [resolvable:$true] %s131
        %134 = dma.hbm_to_vmem [thread:$0]  %s121, 16, %s132, %s123
        %s135 = sadd.s32 %s57, 4
        %s136 = sld [smem:[#allocation4 + %s135]]
        %s137 = sld [smem:[#allocation5 + %s135]]
        %p138 = scmp.eq.s32.totalorder %s137, 1
        %s139 = scalar_select %p138, 10, %s136
        %s140 = smul.addr %s139, 16
        %s141 = scalar_lea.hbm %s2, %s140
        %s142 = scalar_lea.vmem %s56, 4 [#allocation6]
        %s143 = scalar_lea.sflag [#allocation2], 4
        // Predicated region
        $region29: #{tpu_custom_call.1} parent=11 // pred_check
          _
        $region30: #{tpu_custom_call.1} parent=11 // pred_check_branch
          %145 = sbr.rel target = $region32
        $region31: #{tpu_custom_call.1} parent=11 // pred_region
          %146 = sst [smem:[#allocation10]] [#allocation19]
          %147 = sst [smem:[#allocation11]] [#allocation18]
        $region32: #{tpu_custom_call.1} parent=11 // pred_fallthru
          _
        %149 = shalt.err (0)
        %s151 = sshll.u32 %s142, 4
        %s152 = int_to_ptr.vmem [resolvable:$true] %s151
        %154 = dma.hbm_to_vmem [thread:$0]  %s141, 16, %s152, %s143
        %s155 = sadd.s32 %s57, 5
        %s156 = sld [smem:[#allocation4 + %s155]]
        %s157 = sld [smem:[#allocation5 + %s155]]
        %p158 = scmp.eq.s32.totalorder %s157, 1
        %s159 = scalar_select %p158, 10, %s156
        %s160 = smul.addr %s159, 16
        %s161 = scalar_lea.hbm %s2, %s160
        %s162 = scalar_lea.vmem %s56, 5 [#allocation6]
        %s163 = scalar_lea.sflag [#allocation2], 5
        // Predicated region
        $region33: #{tpu_custom_call.1} parent=11 // pred_check
          _
        $region34: #{tpu_custom_call.1} parent=11 // pred_check_branch
          %165 = sbr.rel target = $region36
        $region35: #{tpu_custom_call.1} parent=11 // pred_region
          %166 = sst [smem:[#allocation10]] [#allocation21]
          %167 = sst [smem:[#allocation11]] [#allocation20]
        $region36: #{tpu_custom_call.1} parent=11 // pred_fallthru
          _
        %169 = shalt.err (0)
        %s171 = sshll.u32 %s162, 4
        %s172 = int_to_ptr.vmem [resolvable:$true] %s171
        %174 = dma.hbm_to_vmem [thread:$0]  %s161, 16, %s172, %s163
        %s175 = sadd.s32 %s57, 6
        %s176 = sld [smem:[#allocation4 + %s175]]
        %s177 = sld [smem:[#allocation5 + %s175]]
        %p178 = scmp.eq.s32.totalorder %s177, 1
        %s179 = scalar_select %p178, 10, %s176
        %s180 = smul.addr %s179, 16
        %s181 = scalar_lea.hbm %s2, %s180
        %s182 = scalar_lea.vmem %s56, 6 [#allocation6]
        %s183 = scalar_lea.sflag [#allocation2], 6
        // Predicated region
        $region37: #{tpu_custom_call.1} parent=11 // pred_check
          _
        $region38: #{tpu_custom_call.1} parent=11 // pred_check_branch
          %185 = sbr.rel target = $region40
        $region39: #{tpu_custom_call.1} parent=11 // pred_region
          %186 = sst [smem:[#allocation10]] [#allocation23]
          %187 = sst [smem:[#allocation11]] [#allocation22]
        $region40: #{tpu_custom_call.1} parent=11 // pred_fallthru
          _
        %189 = shalt.err (0)
        %s191 = sshll.u32 %s182, 4
        %s192 = int_to_ptr.vmem [resolvable:$true] %s191
        %194 = dma.hbm_to_vmem [thread:$0]  %s181, 16, %s192, %s183
        %s195 = sadd.s32 %s57, 7
        %s196 = sld [smem:[#allocation4 + %s195]]
        %s197 = sld [smem:[#allocation5 + %s195]]
        %p198 = scmp.eq.s32.totalorder %s197, 1
        %s199 = scalar_select %p198, 10, %s196
        %s200 = smul.addr %s199, 16
        %s201 = scalar_lea.hbm %s2, %s200
        %s202 = scalar_lea.vmem %s56, 7 [#allocation6]
        %s203 = scalar_lea.sflag [#allocation2], 7
        // Predicated region
        $region41: #{tpu_custom_call.1} parent=11 // pred_check
          _
        $region42: #{tpu_custom_call.1} parent=11 // pred_check_branch
          %205 = sbr.rel target = $region44
        $region43: #{tpu_custom_call.1} parent=11 // pred_region
          %206 = sst [smem:[#allocation10]] [#allocation25]
          %207 = sst [smem:[#allocation11]] [#allocation24]
        $region44: #{tpu_custom_call.1} parent=11 // pred_fallthru
          _
        %209 = shalt.err (0)
        %s211 = sshll.u32 %s202, 4
        %s212 = int_to_ptr.vmem [resolvable:$true] %s211
        %214 = dma.hbm_to_vmem [thread:$0]  %s201, 16, %s212, %s203
        %s215 = smul.u32 1, 1
        %s216 = sshll.u32 %s215, 4
        %217 = dma.done [#allocation2], %s216
        %s218 = sshll.u32 %s215, 4
        %219 = dma.done %s83, %s218
        %s220 = sshll.u32 %s215, 4
        %221 = dma.done %s103, %s220
        %s222 = sshll.u32 %s215, 4
        %223 = dma.done %s123, %s222
        %s224 = sshll.u32 %s215, 4
        %225 = dma.done %s143, %s224
        %s226 = sshll.u32 %s215, 4
        %227 = dma.done %s163, %s226
        %s228 = sshll.u32 %s215, 4
        %229 = dma.done %s183, %s228
        %s230 = sshll.u32 %s215, 4
        %231 = dma.done %s203, %s230
        %s232 = sand.u32 %s29, 1
        %s233 = scalar_lea.sflag [#allocation7], %s232
        %s234 = sand.u32 %s29, 1
        %s235 = smul.addr %s234, 8
        %s236 = scalar_lea.vmem [#allocation6], %s235
        // Predicated region
        $region45: #{tpu_custom_call.1} parent=11 // pred_check
          %p237 = pneg %p35
        $region46: #{tpu_custom_call.1} parent=11 // pred_check_branch
          %239 = sbr.rel (%p237) target = $region48
        $region47: #{tpu_custom_call.1} parent=11 // pred_region
          %s241 = ssub.s32 128, 128
          %242 = vsyncadd %s233, %s241
          %s243 = smul.addr %s20, 128
          %s244 = scalar_lea.hbm %s3, %s243
          %s246 = sshll.u32 %s236, 4
          %s247 = int_to_ptr.vmem [resolvable:$true] %s246
          %249 = dma.vmem_to_hbm [thread:$0]  %s247, 128, %s244, %s233
        $region48: #{tpu_custom_call.1} parent=11 // pred_fallthru
          _
      $region12: #{tpu_custom_call.1} parent=5 // pred_fallthru
        _
      %p250 = scmp.le.s32.totalorder 1, %s20
      // Predicated region
      $region49: #{tpu_custom_call.1} parent=5 // pred_check
        %p251 = pneg %p250
      $region50: #{tpu_custom_call.1} parent=5 // pred_check_branch
        %253 = sbr.rel (%p251) target = $region52
      $region51: #{tpu_custom_call.1} parent=5 // pred_region
        %s254 = ssub.s32 %s20, 1
        // Predicated region
        $region53: #{tpu_custom_call.1} parent=51 // pred_check
          %p255 = pneg %p41
        $region54: #{tpu_custom_call.1} parent=51 // pred_check_branch
          %257 = sbr.rel (%p255) target = $region56
        $region55: #{tpu_custom_call.1} parent=51 // pred_region
          %s258 = sand.u32 %s32, 1
          %s259 = scalar_lea.sflag [#allocation7], %s258
          %s260 = sand.u32 %s32, 1
          %s261 = smul.addr %s260, 8
          %s262 = scalar_lea.vmem [#allocation6], %s261
          %263 = dma.done %s259, 128
        $region56: #{tpu_custom_call.1} parent=51 // pred_fallthru
          _
      $region52: #{tpu_custom_call.1} parent=5 // pred_fallthru
        _
    $region6: #{tpu_custom_call.1} parent=1 // loop_footer
      %s24 = sadd.s32 1, %s20
    $region7: #{tpu_custom_call.1} parent=1 // loop_footer_branch
      %19 = sbr.rel target = $region3
    $region8: #{tpu_custom_call.1} parent=1 // loop_exit
      _
    %264 = vsyncpa [#allocation7], 1
    %s265 = scalar_lea.sflag [#allocation7], 1
    %266 = vsyncpa %s265, 1
  %267 = vsyncmov [#allocation2]
  %s268 = vpop.sfrf %267
  %p269 = scmp.eq.s32.totalorder %s268, 0
  %p270 = pneg %p269
  %272 = shalt.err (%p270)
  %s273 = scalar_lea.sflag [#allocation2], 1
  %274 = vsyncmov %s273
  %s275 = vpop.sfrf %274
  %p276 = scmp.eq.s32.totalorder %s275, 0
  %p277 = pneg %p276
  %279 = shalt.err (%p277)
  %s280 = scalar_lea.sflag [#allocation2], 2
  %281 = vsyncmov %s280
  %s282 = vpop.sfrf %281
  %p283 = scmp.eq.s32.totalorder %s282, 0
  %p284 = pneg %p283
  %286 = shalt.err (%p284)
  %s287 = scalar_lea.sflag [#allocation2], 3
  %288 = vsyncmov %s287
  %s289 = vpop.sfrf %288
  %p290 = scmp.eq.s32.totalorder %s289, 0
  %p291 = pneg %p290
  %293 = shalt.err (%p291)
  %s294 = scalar_lea.sflag [#allocation2], 4
  %295 = vsyncmov %s294
  %s296 = vpop.sfrf %295
  %p297 = scmp.eq.s32.totalorder %s296, 0
  %p298 = pneg %p297
  %300 = shalt.err (%p298)
  %s301 = scalar_lea.sflag [#allocation2], 5
  %302 = vsyncmov %s301
  %s303 = vpop.sfrf %302
  %p304 = scmp.eq.s32.totalorder %s303, 0
  %p305 = pneg %p304
  %307 = shalt.err (%p305)
  %s308 = scalar_lea.sflag [#allocation2], 6
  %309 = vsyncmov %s308
  %s310 = vpop.sfrf %309
  %p311 = scmp.eq.s32.totalorder %s310, 0
  %p312 = pneg %p311
  %314 = shalt.err (%p312)
  %s315 = scalar_lea.sflag [#allocation2], 7
  %316 = vsyncmov %s315
  %s317 = vpop.sfrf %316
  %p318 = scmp.eq.s32.totalorder %s317, 0
  %p319 = pneg %p318
  %321 = shalt.err (%p319)

</llo_original>
